<compile_context>
chip_gen: v7x
topology: tpu7x:2x2x1
jax: 0.10.0
libtpu: 0.0.40
codegen_flags: <defaults>
</compile_context>

<pallas_src>
import functools

import jax
import jax.numpy as jnp
from jax.experimental import pallas as pl
from jax.experimental.pallas import tpu as pltpu


def _depth_attn_kernel(w_ref, b_ref, x_ref, o_ref, pool_ref, *, c_scale, k):
    """One (batch, time-block) grid step.

    w_ref    : SMEM (k,)             depth-conv taps
    b_ref    : SMEM (1,)             depth-conv bias
    x_ref    : VMEM (1, C, H, TW)    input block
    o_ref    : VMEM (1, C, H, TW)    output block
    pool_ref : VMEM (C + k - 1, TW)  zero-padded pooled scratch
    """
    pad = k // 2
    x = x_ref[0]                                   # (C, H, TW) f32
    C, H, TW = x.shape

    # --- AdaptiveAvgPool2d((1, W)): mean over the EEG-channel axis H (sublane reduce)
    pooled = jnp.sum(x, axis=1) * jnp.float32(1.0 / H)          # (C, TW)

    # --- depth-wise conv along C: k static scalar*vector FMAs on the VPU
    pool_ref[...] = jnp.zeros_like(pool_ref)
    pool_ref[pad:pad + C, :] = pooled
    acc = jnp.zeros((C, TW), jnp.float32)
    for j in range(k):                              # static, unrolled
        acc = acc + w_ref[j] * pool_ref[j:j + C, :]
    y = acc + b_ref[0]

    # --- numerically stable softmax over the depth axis C
    y = y - jnp.max(y, axis=0, keepdims=True)
    e = jnp.exp(y)
    a = e / jnp.sum(e, axis=0, keepdims=True)                   # (C, TW)

    # --- out = softmax * C * x  (scale the small (C,TW) map, broadcast over H)
    scale = (a * jnp.float32(c_scale))[:, None, :]              # (C, 1, TW)
    o_ref[0] = (scale * x).astype(o_ref.dtype)                  # lane-dense store


def eeg_depth_attention(x, conv_w, conv_b, *, C, W, k=7, time_block=None):
    """x: (N, C, H, W) float32; conv_w: (k,) taps; conv_b: (1,) bias."""
    N, Cx, H, Wx = x.shape
    assert Cx == C, "depth-channel dim must equal constructor C"
    assert k % 2 == 1 and conv_w.shape == (k,) and conv_b.shape == (1,)
    # AdaptiveAvgPool2d((1, W)) reduces only over H when the time dim already equals W
    # (always the case in LMDA-Net usage).
    assert Wx == W, "adaptive pooling with W_out != W_in is not supported"
    # TODO(synk): general adaptive average pooling (W_out != W_in) not implemented.

    if time_block is None:
        time_block = 512 if (W % 512 == 0 and W > 512) else W
    assert W % time_block == 0
    n_w = W // time_block

    kern = functools.partial(_depth_attn_kernel, c_scale=float(C), k=k)

    return pl.pallas_call(
        kern,
        out_shape=jax.ShapeDtypeStruct(x.shape, x.dtype),
        grid_spec=pltpu.PrefetchScalarGridSpec(
            num_scalar_prefetch=0,
            grid=(N, n_w),
            in_specs=[
                pl.BlockSpec(memory_space=pltpu.SMEM),    # conv taps, resident
                pl.BlockSpec(memory_space=pltpu.SMEM),    # conv bias, resident
                pl.BlockSpec((1, C, H, time_block), lambda n, w: (n, 0, 0, w)),
            ],
            out_specs=pl.BlockSpec((1, C, H, time_block), lambda n, w: (n, 0, 0, w)),
            scratch_shapes=[pltpu.VMEM((C + k - 1, time_block), jnp.float32)],
        ),
        compiler_params=pltpu.CompilerParams(
            dimension_semantics=("parallel", "parallel")),
    )(conv_w, conv_b, x)


def _reference(x, conv_w, conv_b, C):
    """Pure-JAX reference mirroring the PyTorch module."""
    k = conv_w.shape[0]
    pad = k // 2
    pooled = jnp.mean(x, axis=2, keepdims=True)                 # (N, C, 1, W)
    t = jnp.transpose(pooled, (0, 2, 1, 3))                     # (N, 1, C, W)
    tp = jnp.pad(t, ((0, 0), (0, 0), (pad, pad), (0, 0)))
    y = conv_b[0] + sum(conv_w[j] * tp[:, :, j:j + x.shape[1], :] for j in range(k))
    y = jax.nn.softmax(y, axis=-2)                              # over the C axis
    y = jnp.transpose(y, (0, 2, 1, 3))                          # (N, C, 1, W)
    return y * C * x


if __name__ == "__main__":
    key = jax.random.PRNGKey(0)
    kx, kw, kb = jax.random.split(key, 3)

    # (batch N, depth channels C, EEG channels H, time samples W)
    N, C, H, W, k = 2, 16, 8, 128, 7
    x = jax.random.normal(kx, (N, C, H, W), jnp.float32)

    # torch.nn.Conv2d(1, 1, (k, 1)) default init: U(-1/sqrt(k), 1/sqrt(k))
    bound = 1.0 / (k ** 0.5)
    conv_w = jax.random.uniform(kw, (k,), jnp.float32, -bound, bound)
    conv_b = jax.random.uniform(kb, (1,), jnp.float32, -bound, bound)

    out = eeg_depth_attention(x, conv_w, conv_b, C=C, W=W, k=k)
    jax.block_until_ready(out)

    ref = _reference(x, conv_w, conv_b, C)
    assert out.shape == x.shape
    assert jnp.allclose(out, ref, atol=1e-5, rtol=1e-5), \
        float(jnp.max(jnp.abs(out - ref)))

    print("KERNEL_OK")
</pallas_src>

<mosaic_0001>
module attributes {stable_mosaic.version = 11 : i64} {
  func.func @_depth_attn_kernel(%arg0: i32, %arg1: i32, %arg2: memref<7xf32, #tpu.memory_space<smem>>, %arg3: memref<1xf32, #tpu.memory_space<smem>>, %arg4: memref<1x16x8x128xf32, #tpu.memory_space<vmem>>, %arg5: memref<1x16x8x128xf32, #tpu.memory_space<vmem>>, %arg6: memref<22x128xf32, #tpu.memory_space<vmem>>) attributes {dimension_semantics = [#tpu.dimension_semantics<parallel>, #tpu.dimension_semantics<parallel>], iteration_bounds = array<i64: 2, 1>, scalar_prefetch = 0 : i64, scratch_operands = 1 : i64, tpu.core_type = #tpu.core_type<tc>, window_params = [{transform_indices = @transform_0, window_bounds = array<i64: 7>}, {transform_indices = @transform_1, window_bounds = array<i64: 1>}, {transform_indices = @transform_2, window_bounds = array<i64: 1, 16, 8, 128>}, {transform_indices = @transform_3, window_bounds = array<i64: 1, 16, 8, 128>}]} {
    %c0 = arith.constant 0 : index
    %c0_0 = arith.constant 0 : index
    %c0_1 = arith.constant 0 : index
    %c0_2 = arith.constant 0 : index
    %0 = vector.load %arg4[%c0, %c0_0, %c0_1, %c0_2] : memref<1x16x8x128xf32, #tpu.memory_space<vmem>>, vector<1x16x8x128xf32>
    %1 = vector.shape_cast %0 : vector<1x16x8x128xf32> to vector<16x8x128xf32>
    %cst = arith.constant dense<0.000000e+00> : vector<16x128xf32>
    %2 = vector.multi_reduction <add>, %1, %cst [1] : vector<16x8x128xf32> to vector<16x128xf32>
    %cst_3 = arith.constant 1.250000e-01 : f32
    %3 = vector.broadcast %cst_3 : f32 to vector<16x128xf32>
    %4 = arith.mulf %2, %3 : vector<16x128xf32>
    %cst_4 = arith.constant 0.000000e+00 : f32
    %5 = vector.broadcast %cst_4 : f32 to vector<22x128xf32>
    %c0_5 = arith.constant 0 : index
    %c0_6 = arith.constant 0 : index
    %6 = vector.load %arg6[%c0_5, %c0_6] : memref<22x128xf32, #tpu.memory_space<vmem>>, vector<22x128xf32>
    tpu.vector_store %arg6[%c0_5, %c0_6], %5 {strides = array<i32>} : memref<22x128xf32, #tpu.memory_space<vmem>>, vector<22x128xf32>,
    %c3 = arith.constant 3 : index
    %c0_7 = arith.constant 0 : index
    %7 = vector.load %arg6[%c3, %c0_7] : memref<22x128xf32, #tpu.memory_space<vmem>>, vector<16x128xf32>
    tpu.vector_store %arg6[%c3, %c0_7], %4 {strides = array<i32>} : memref<22x128xf32, #tpu.memory_space<vmem>>, vector<16x128xf32>,
    %cst_8 = arith.constant 0.000000e+00 : f32
    %8 = vector.broadcast %cst_8 : f32 to vector<16x128xf32>
    %c0_9 = arith.constant 0 : index
    %9 = memref.load %arg2[%c0_9] : memref<7xf32, #tpu.memory_space<smem>>
    %c0_10 = arith.constant 0 : index
    %c0_11 = arith.constant 0 : index
    %10 = vector.load %arg6[%c0_10, %c0_11] : memref<22x128xf32, #tpu.memory_space<vmem>>, vector<16x128xf32>
    %11 = vector.broadcast %9 : f32 to vector<16x128xf32>
    %12 = arith.mulf %11, %10 : vector<16x128xf32>
    %13 = arith.addf %8, %12 : vector<16x128xf32>
    %c1 = arith.constant 1 : index
    %14 = memref.load %arg2[%c1] : memref<7xf32, #tpu.memory_space<smem>>
    %c1_12 = arith.constant 1 : index
    %c0_13 = arith.constant 0 : index
    %15 = vector.load %arg6[%c1_12, %c0_13] : memref<22x128xf32, #tpu.memory_space<vmem>>, vector<16x128xf32>
    %16 = vector.broadcast %14 : f32 to vector<16x128xf32>
    %17 = arith.mulf %16, %15 : vector<16x128xf32>
    %18 = arith.addf %13, %17 : vector<16x128xf32>
    %c2 = arith.constant 2 : index
    %19 = memref.load %arg2[%c2] : memref<7xf32, #tpu.memory_space<smem>>
    %c2_14 = arith.constant 2 : index
    %c0_15 = arith.constant 0 : index
    %20 = vector.load %arg6[%c2_14, %c0_15] : memref<22x128xf32, #tpu.memory_space<vmem>>, vector<16x128xf32>
    %21 = vector.broadcast %19 : f32 to vector<16x128xf32>
    %22 = arith.mulf %21, %20 : vector<16x128xf32>
    %23 = arith.addf %18, %22 : vector<16x128xf32>
    %c3_16 = arith.constant 3 : index
    %24 = memref.load %arg2[%c3_16] : memref<7xf32, #tpu.memory_space<smem>>
    %c3_17 = arith.constant 3 : index
    %c0_18 = arith.constant 0 : index
    %25 = vector.load %arg6[%c3_17, %c0_18] : memref<22x128xf32, #tpu.memory_space<vmem>>, vector<16x128xf32>
    %26 = vector.broadcast %24 : f32 to vector<16x128xf32>
    %27 = arith.mulf %26, %25 : vector<16x128xf32>
    %28 = arith.addf %23, %27 : vector<16x128xf32>
    %c4 = arith.constant 4 : index
    %29 = memref.load %arg2[%c4] : memref<7xf32, #tpu.memory_space<smem>>
    %c4_19 = arith.constant 4 : index
    %c0_20 = arith.constant 0 : index
    %30 = vector.load %arg6[%c4_19, %c0_20] : memref<22x128xf32, #tpu.memory_space<vmem>>, vector<16x128xf32>
    %31 = vector.broadcast %29 : f32 to vector<16x128xf32>
    %32 = arith.mulf %31, %30 : vector<16x128xf32>
    %33 = arith.addf %28, %32 : vector<16x128xf32>
    %c5 = arith.constant 5 : index
    %34 = memref.load %arg2[%c5] : memref<7xf32, #tpu.memory_space<smem>>
    %c5_21 = arith.constant 5 : index
    %c0_22 = arith.constant 0 : index
    %35 = vector.load %arg6[%c5_21, %c0_22] : memref<22x128xf32, #tpu.memory_space<vmem>>, vector<16x128xf32>
    %36 = vector.broadcast %34 : f32 to vector<16x128xf32>
    %37 = arith.mulf %36, %35 : vector<16x128xf32>
    %38 = arith.addf %33, %37 : vector<16x128xf32>
    %c6 = arith.constant 6 : index
    %39 = memref.load %arg2[%c6] : memref<7xf32, #tpu.memory_space<smem>>
    %c6_23 = arith.constant 6 : index
    %c0_24 = arith.constant 0 : index
    %40 = vector.load %arg6[%c6_23, %c0_24] : memref<22x128xf32, #tpu.memory_space<vmem>>, vector<16x128xf32>
    %41 = vector.broadcast %39 : f32 to vector<16x128xf32>
    %42 = arith.mulf %41, %40 : vector<16x128xf32>
    %43 = arith.addf %38, %42 : vector<16x128xf32>
    %c0_25 = arith.constant 0 : index
    %44 = memref.load %arg3[%c0_25] : memref<1xf32, #tpu.memory_space<smem>>
    %45 = vector.broadcast %44 : f32 to vector<16x128xf32>
    %46 = arith.addf %43, %45 : vector<16x128xf32>
    %cst_26 = arith.constant dense<0xFF800000> : vector<128xf32>
    %47 = vector.multi_reduction <maximumf>, %46, %cst_26 [0] : vector<16x128xf32> to vector<128xf32>
    %48 = vector.shape_cast %47 : vector<128xf32> to vector<1x128xf32>
    %49 = vector.broadcast %48 : vector<1x128xf32> to vector<16x128xf32>
    %50 = arith.subf %46, %49 : vector<16x128xf32>
    %51 = math.exp %50 : vector<16x128xf32>
    %cst_27 = arith.constant dense<0.000000e+00> : vector<128xf32>
    %52 = vector.multi_reduction <add>, %51, %cst_27 [0] : vector<16x128xf32> to vector<128xf32>
    %53 = vector.shape_cast %52 : vector<128xf32> to vector<1x128xf32>
    %54 = vector.broadcast %53 : vector<1x128xf32> to vector<16x128xf32>
    %55 = arith.divf %51, %54 : vector<16x128xf32>
    %cst_28 = arith.constant 1.600000e+01 : f32
    %56 = vector.broadcast %cst_28 : f32 to vector<16x128xf32>
    %57 = arith.mulf %55, %56 : vector<16x128xf32>
    %58 = vector.shape_cast %57 : vector<16x128xf32> to vector<16x1x128xf32>
    %59 = vector.broadcast %58 : vector<16x1x128xf32> to vector<16x8x128xf32>
    %60 = arith.mulf %59, %1 : vector<16x8x128xf32>
    %c0_29 = arith.constant 0 : index
    %c0_30 = arith.constant 0 : index
    %c0_31 = arith.constant 0 : index
    %c0_32 = arith.constant 0 : index
    %61 = vector.load %arg5[%c0_29, %c0_30, %c0_31, %c0_32] : memref<1x16x8x128xf32, #tpu.memory_space<vmem>>, vector<1x16x8x128xf32>
    %62 = vector.shape_cast %61 : vector<1x16x8x128xf32> to vector<16x8x128xf32>
    %63 = vector.shape_cast %60 : vector<16x8x128xf32> to vector<1x16x8x128xf32>
    tpu.vector_store %arg5[%c0_29, %c0_30, %c0_31, %c0_32], %63 {strides = array<i32>} : memref<1x16x8x128xf32, #tpu.memory_space<vmem>>, vector<1x16x8x128xf32>,
    return
  }
  func.func @transform_0(%arg0: i32, %arg1: i32) -> i32 {
    %c0_i32 = arith.constant 0 : i32
    %c0_i32_0 = arith.constant 0 : i32
    return %c0_i32 : i32
  }
  func.func @transform_1(%arg0: i32, %arg1: i32) -> i32 {
    %c0_i32 = arith.constant 0 : i32
    %c0_i32_0 = arith.constant 0 : i32
    return %c0_i32 : i32
  }
  func.func @transform_2(%arg0: i32, %arg1: i32) -> (i32, i32, i32, i32) {
    %c0_i32 = arith.constant 0 : i32
    %c0_i32_0 = arith.constant 0 : i32
    %c0_i32_1 = arith.constant 0 : i32
    return %arg0, %c0_i32, %c0_i32_0, %arg1 : i32, i32, i32, i32
  }
  func.func @transform_3(%arg0: i32, %arg1: i32) -> (i32, i32, i32, i32) {
    %c0_i32 = arith.constant 0 : i32
    %c0_i32_0 = arith.constant 0 : i32
    %c0_i32_1 = arith.constant 0 : i32
    return %arg0, %c0_i32, %c0_i32_0, %arg1 : i32, i32, i32, i32
  }
}

</mosaic_0001>

<llo_original>
// kernel: tpu_custom_call.1
$region0: #{tpu_custom_call.1}
  #allocation0 [shape = 'u32[]', space=smem, size = 0x4, offset = 0x4, fixed_abs, tag = 'smem constant byte address 0x4 - core index']
  #allocation1 [shape = 'u32[144,128]{1,0:T(1,128)}', space=vmem, size = 0x12000, scoped, tag = 'internal scratch']
  #allocation2 [shape = 'f32[22,128]{1,0:T(8,128)}', space=vmem, size = 0x3000, scoped, tag = 'scratch operand']
  #allocation3 [shape = 'f32[1]{0:T(128)S(6)}', space=smem, size = 0x200, scoped, tag = 'scoped memory for tpu_custom_call.1']
  %s0 = inlined_call_operand.vmem [shape: f32[7], index: 0, kind: input, shape index: {}]
  %s1 = inlined_call_operand.<no memory space> [shape: f32[1], index: 1, kind: input, shape index: {}]
  %s2 = inlined_call_operand.hbm [shape: f32[2,16,8,128], index: 2, kind: input, shape index: {}]
  %s3 = inlined_call_operand.hbm [shape: f32[2,16,8,128], index: 3, kind: output, shape index: {}]
  %s4 = sld [smem:[#allocation0]]
  $region53: #{tpu_custom_call.1} parent=0
    _
  %s6 = ssub.s32 1, %s4
  %s7 = scalar_select 0, %s6, %s4
  %8 = sst [smem:[#allocation3]] %s1
  $region1: #{tpu_custom_call.1} parent=0
    #allocation4 [shape = 'u8[512]{0}', space=smem, size = 0x200, scoped, tag = 'input window, operand 0, single buffered']
    #allocation5 [shape = 's32[2]{0}', space=sflag, size = 0x8, scoped, tag = 'scoped memory for tpu_custom_call.1']
    #allocation6 [shape = 's32[2]{0}', space=sflag, size = 0x8, scoped, tag = 'scoped memory for tpu_custom_call.1']
    #allocation7 [shape = 's32[2]{0}', space=sflag, size = 0x8, scoped, tag = 'scoped memory for tpu_custom_call.1']
    #allocation8 [shape = 'u8[131072]{0}', space=vmem, size = 0x20000, scoped, tag = 'input window, operand 2']
    #allocation9 [shape = 'u8[131072]{0}', space=vmem, size = 0x20000, scoped, tag = 'output window, operand 0']
    %9 = vsyncpa [#allocation7], 0
    %10 = vsyncpa [#allocation5], 0
    %s11 = scalar_lea.sflag [#allocation5], 1
    %12 = vsyncpa %s11, 0
    %13 = vsyncpa [#allocation6], 0
    %s14 = scalar_lea.sflag [#allocation6], 1
    %15 = vsyncpa %s14, 0
    loop: start=0, step=1, limit=4
    $region2: #{tpu_custom_call.1} parent=1 // loop_pre_header
      _
    $region3: #{tpu_custom_call.1} parent=1 // loop_header
      %s17 = sphi 0, %s21
      %p18 = scmp.ge.s32.totalorder %s17, 4
      %s24 = sphi 0, %s36
      %s25 = sphi 0, %s32
      %s26 = sphi 0, %s24
      %s27 = sphi 0, %s25
      %s28 = sphi 0, %s26
      %s29 = sphi 0, %s27
      %s37 = sphi 0, %s37
      %s39 = sphi 0, %s37
      %s40 = sphi 0, %s39
      %s54 = sphi 0, %s40
      %s58 = sphi 0, %s58
      %s60 = sphi 0, %s58
      %s61 = sphi 0, %s60
      %s75 = sphi 0, %s61
      %s83 = sphi 0, %s85
      %s86 = sphi 0, %s83
      %s87 = sphi 0, %s86
      %s103 = sphi 0, %s87
      %s111 = sphi 0, %s113
      %s114 = sphi 0, %s111
      %s115 = sphi 0, %s114
      %s131 = sphi 0, %s115
    $region4: #{tpu_custom_call.1} parent=1 // loop_header_branch
      %20 = sbr.rel (%p18) target = $region8
    $region5: #{tpu_custom_call.1} parent=1 // loop_body
      %s22 = ssub.s32 %s17, 1
      %s23 = ssub.s32 %s17, 2
      %s30 = sadd.s32 1, %s25
      %p31 = scmp.ge.s32.totalorder %s30, 1
      %s32 = scalar_select %p31, 0, %s30
      %s33 = sadd.s32 1, %s24
      %s34 = scalar_select %p31, %s33, %s24
      %p35 = scmp.ge.s32.totalorder %s34, 2
      %s36 = scalar_select %p35, 0, %s34
      %s38 = sadd.s32 %s37, 1
      %p41 = scmp.eq.s32.totalorder %s17, 1
      %p42 = scmp.ne.s32.totalorder %s37, %s39
      %p43 = scmp.eq.s32.totalorder %s17, 0
      %p44 = por %p42, %p43
      %p45 = scmp.ne.s32.totalorder %s37, %s39
      %p46 = scmp.eq.s32.totalorder %s22, 1
      %p47 = por %p45, %p46
      %p48 = scmp.ne.s32.totalorder %s39, %s40
      %p49 = scmp.eq.s32.totalorder %s22, 0
      %p50 = por %p48, %p49
      %p51 = scmp.ne.s32.totalorder %s39, %s40
      %p52 = scmp.eq.s32.totalorder %s23, 1
      %p53 = por %p51, %p52
      %p55 = scmp.ne.s32.totalorder %s40, %s54
      %p56 = scmp.eq.s32.totalorder %s23, 0
      %p57 = por %p55, %p56
      %s59 = sadd.s32 %s58, 1
      %p62 = scmp.eq.s32.totalorder %s17, 1
      %p63 = scmp.ne.s32.totalorder %s58, %s60
      %p64 = scmp.eq.s32.totalorder %s17, 0
      %p65 = por %p63, %p64
      %p66 = scmp.ne.s32.totalorder %s58, %s60
      %p67 = scmp.eq.s32.totalorder %s22, 1
      %p68 = por %p66, %p67
      %p69 = scmp.ne.s32.totalorder %s60, %s61
      %p70 = scmp.eq.s32.totalorder %s22, 0
      %p71 = por %p69, %p70
      %p72 = scmp.ne.s32.totalorder %s60, %s61
      %p73 = scmp.eq.s32.totalorder %s23, 1
      %p74 = por %p72, %p73
      %p76 = scmp.ne.s32.totalorder %s61, %s75
      %p77 = scmp.eq.s32.totalorder %s23, 0
      %p78 = por %p76, %p77
      %s79 = ssub.s32 %s24, %s36
      %s80 = ssub.s32 %s25, %s32
      %s81 = sor.u32 %s79, %s80
      %p82 = scmp.eq.s32.totalorder %s81, 0
      %s84 = sadd.s32 %s83, 1
      %s85 = scalar_select %p82, %s83, %s84
      %p88 = pneg %p82
      %p89 = scmp.eq.s32.totalorder %s17, 1
      %p90 = por %p88, %p89
      %p91 = scmp.ne.s32.totalorder %s83, %s86
      %p92 = scmp.eq.s32.totalorder %s17, 0
      %p93 = por %p91, %p92
      %p94 = scmp.ne.s32.totalorder %s83, %s86
      %p95 = scmp.eq.s32.totalorder %s22, 1
      %p96 = por %p94, %p95
      %p97 = scmp.ne.s32.totalorder %s86, %s87
      %p98 = scmp.eq.s32.totalorder %s22, 0
      %p99 = por %p97, %p98
      %p100 = scmp.ne.s32.totalorder %s86, %s87
      %p101 = scmp.eq.s32.totalorder %s23, 1
      %p102 = por %p100, %p101
      %p104 = scmp.ne.s32.totalorder %s87, %s103
      %p105 = scmp.eq.s32.totalorder %s23, 0
      %p106 = por %p104, %p105
      %s107 = ssub.s32 %s24, %s36
      %s108 = ssub.s32 %s25, %s32
      %s109 = sor.u32 %s107, %s108
      %p110 = scmp.eq.s32.totalorder %s109, 0
      %s112 = sadd.s32 %s111, 1
      %s113 = scalar_select %p110, %s111, %s112
      %p116 = pneg %p110
      %p117 = scmp.eq.s32.totalorder %s17, 1
      %p118 = por %p116, %p117
      %p119 = scmp.ne.s32.totalorder %s111, %s114
      %p120 = scmp.eq.s32.totalorder %s17, 0
      %p121 = por %p119, %p120
      %p122 = scmp.ne.s32.totalorder %s111, %s114
      %p123 = scmp.eq.s32.totalorder %s22, 1
      %p124 = por %p122, %p123
      %p125 = scmp.ne.s32.totalorder %s114, %s115
      %p126 = scmp.eq.s32.totalorder %s22, 0
      %p127 = por %p125, %p126
      %p128 = scmp.ne.s32.totalorder %s114, %s115
      %p129 = scmp.eq.s32.totalorder %s23, 1
      %p130 = por %p128, %p129
      %p132 = scmp.ne.s32.totalorder %s115, %s131
      %p133 = scmp.eq.s32.totalorder %s23, 0
      %p134 = por %p132, %p133
      %p135 = scmp.le.s32.totalorder 1, %s17
      %p136 = scmp.lt.s32.totalorder %s17, 3
      %p137 = pnand %p135, %p136
      %p138 = pneg %p137
      // Predicated region
      $region9: #{tpu_custom_call.1} parent=5 // pred_check
        _
      $region10: #{tpu_custom_call.1} parent=5 // pred_check_branch
        %140 = sbr.rel (%p137) target = $region12
      $region11: #{tpu_custom_call.1} parent=5 // pred_region
        %s141 = ssub.s32 %s17, 1
        // Predicated region
        $region13: #{tpu_custom_call.1} parent=11 // pred_check
          %p142 = pneg %p50
        $region14: #{tpu_custom_call.1} parent=11 // pred_check_branch
          %144 = sbr.rel (%p142) target = $region16
        $region15: #{tpu_custom_call.1} parent=11 // pred_region
          %s146 = ssub.s32 16, 16
          %147 = vsyncadd [#allocation7], %s146
          %s149 = sshll.u32 %s0, 4
          %s150 = int_to_ptr.vmem [resolvable:$true] %s149
          %152 = dma.vmem_to_smem %s150, 16, [#allocation4], [#allocation7]
        $region16: #{tpu_custom_call.1} parent=11 // pred_fallthru
          _
        // Predicated region
        $region17: #{tpu_custom_call.1} parent=11 // pred_check
          %p153 = pneg %p71
        $region18: #{tpu_custom_call.1} parent=11 // pred_check_branch
          %155 = sbr.rel (%p153) target = $region20
        $region19: #{tpu_custom_call.1} parent=11 // pred_region
          _
        $region20: #{tpu_custom_call.1} parent=11 // pred_fallthru
          _
      $region12: #{tpu_custom_call.1} parent=5 // pred_fallthru
        _
      %p156 = scmp.lt.s32.totalorder %s17, 2
      // Predicated region
      $region21: #{tpu_custom_call.1} parent=5 // pred_check
        %p157 = pneg %p156
      $region22: #{tpu_custom_call.1} parent=5 // pred_check_branch
        %159 = sbr.rel (%p157) target = $region24
      $region23: #{tpu_custom_call.1} parent=5 // pred_region
        // Predicated region
        $region25: #{tpu_custom_call.1} parent=23 // pred_check
          %p160 = pneg %p93
        $region26: #{tpu_custom_call.1} parent=23 // pred_check_branch
          %162 = sbr.rel (%p160) target = $region28
        $region27: #{tpu_custom_call.1} parent=23 // pred_region
          %s163 = sand.u32 %s83, 1
          %s164 = scalar_lea.sflag [#allocation5], %s163
          %s165 = sand.u32 %s83, 1
          %s166 = smul.addr %s165, 128
          %s167 = scalar_lea.vmem [#allocation8], %s166
          %s169 = ssub.s32 2048, 2048
          %170 = vsyncadd %s164, %s169
          %s171 = smul.addr %s24, 16
          %s172 = sadd.s32 %s25, %s171
          %s173 = smul.addr %s172, 128
          %s174 = scalar_lea.hbm %s2, %s173
          %s175 = sshll.u32 %s167, 4
          %s176 = int_to_ptr.vmem [resolvable:$true] %s175
          %181 = dma.hbm_to_vmem [thread:$0]  %s174, 2048, %s176, %s164, 128, 128, 8
        $region28: #{tpu_custom_call.1} parent=23 // pred_fallthru
          _
      $region24: #{tpu_custom_call.1} parent=5 // pred_fallthru
        _
      %p182 = scmp.le.s32.totalorder 1, %s17
      %p183 = scmp.lt.s32.totalorder %s17, 3
      %p184 = pnand %p182, %p183
      %p185 = pneg %p184
      // Predicated region
      $region29: #{tpu_custom_call.1} parent=5 // pred_check
        _
      $region30: #{tpu_custom_call.1} parent=5 // pred_check_branch
        %187 = sbr.rel (%p184) target = $region32
      $region31: #{tpu_custom_call.1} parent=5 // pred_region
        %s188 = ssub.s32 %s17, 1
        // Predicated region
        $region33: #{tpu_custom_call.1} parent=31 // pred_check
          %p189 = pneg %p50
        $region34: #{tpu_custom_call.1} parent=31 // pred_check_branch
          %191 = sbr.rel (%p189) target = $region36
        $region35: #{tpu_custom_call.1} parent=31 // pred_region
          %192 = dma.done [#allocation7], 16
        $region36: #{tpu_custom_call.1} parent=31 // pred_fallthru
          _
        %s193 = sand.u32 %s86, 1
        %s194 = scalar_lea.sflag [#allocation5], %s193
        %s195 = sand.u32 %s86, 1
        %s196 = smul.addr %s195, 128
        %s197 = scalar_lea.vmem [#allocation8], %s196
        // Predicated region
        $region37: #{tpu_custom_call.1} parent=31 // pred_check
          %p198 = pneg %p99
        $region38: #{tpu_custom_call.1} parent=31 // pred_check_branch
          %200 = sbr.rel (%p198) target = $region40
        $region39: #{tpu_custom_call.1} parent=31 // pred_region
          %201 = dma.done %s194, 2048
        $region40: #{tpu_custom_call.1} parent=31 // pred_fallthru
          _
        %202 = sfence
        %p203 = pneg %p50
        %p204 = pneg %p47
        %p205 = pneg %p71
        %p206 = pneg %p68
        %s207 = sand.u32 %s86, 1
        %s208 = scalar_lea.sflag [#allocation5], %s207
        %s209 = sand.u32 %s86, 1
        %s210 = smul.addr %s209, 128
        %s211 = scalar_lea.vmem [#allocation8], %s210
        %p212 = pneg %p99
        %p213 = pneg %p96
        %p214 = pneg %p127
        %p215 = pneg %p124
        %s216 = sand.u32 %s114, 1
        %s217 = scalar_lea.sflag [#allocation6], %s216
        %s218 = sand.u32 %s114, 1
        %s219 = smul.addr %s218, 128
        %s220 = scalar_lea.vmem [#allocation9], %s219
        %v221 = vld [vmem:[%s197] sm:$0xff]
        %v222 = vld [vmem:[%s197 + $0x8] sm:$0xff]
        %v223 = vld [vmem:[%s197 + $0x10] sm:$0xff]
        %v224 = vld [vmem:[%s197 + $0x18] sm:$0xff]
        %v225 = vld [vmem:[%s197 + $0x20] sm:$0xff]
        %v226 = vld [vmem:[%s197 + $0x28] sm:$0xff]
        %v227 = vld [vmem:[%s197 + $0x30] sm:$0xff]
        %v228 = vld [vmem:[%s197 + $0x38] sm:$0xff]
        %v229 = vld [vmem:[%s197 + $0x40] sm:$0xff]
        %v230 = vld [vmem:[%s197 + $0x48] sm:$0xff]
        %v231 = vld [vmem:[%s197 + $0x50] sm:$0xff]
        %v232 = vld [vmem:[%s197 + $0x58] sm:$0xff]
        %v233 = vld [vmem:[%s197 + $0x60] sm:$0xff]
        %v234 = vld [vmem:[%s197 + $0x68] sm:$0xff]
        %v235 = vld [vmem:[%s197 + $0x70] sm:$0xff]
        %v236 = vld [vmem:[%s197 + $0x78] sm:$0xff]
        %v237 = vrot.slane %v221, 4
        %v238 = vadd.f32 %v221, %v237
        %v239 = vrot.slane %v238, 2
        %v240 = vadd.f32 %v238, %v239
        %v241 = vrot.slane %v240, 1
        %v242 = vadd.f32 %v240, %v241
        %v243 = vrot.slane %v222, 4
        %v244 = vadd.f32 %v222, %v243
        %v245 = vrot.slane %v244, 2
        %v246 = vadd.f32 %v244, %v245
        %v247 = vrot.slane %v246, 1
        %v248 = vadd.f32 %v246, %v247
        %v249 = vrot.slane %v223, 4
        %v250 = vadd.f32 %v223, %v249
        %v251 = vrot.slane %v250, 2
        %v252 = vadd.f32 %v250, %v251
        %v253 = vrot.slane %v252, 1
        %v254 = vadd.f32 %v252, %v253
        %v255 = vrot.slane %v224, 4
        %v256 = vadd.f32 %v224, %v255
        %v257 = vrot.slane %v256, 2
        %v258 = vadd.f32 %v256, %v257
        %v259 = vrot.slane %v258, 1
        %v260 = vadd.f32 %v258, %v259
        %v261 = vrot.slane %v225, 4
        %v262 = vadd.f32 %v225, %v261
        %v263 = vrot.slane %v262, 2
        %v264 = vadd.f32 %v262, %v263
        %v265 = vrot.slane %v264, 1
        %v266 = vadd.f32 %v264, %v265
        %v267 = vrot.slane %v226, 4
        %v268 = vadd.f32 %v226, %v267
        %v269 = vrot.slane %v268, 2
        %v270 = vadd.f32 %v268, %v269
        %v271 = vrot.slane %v270, 1
        %v272 = vadd.f32 %v270, %v271
        %v273 = vrot.slane %v227, 4
        %v274 = vadd.f32 %v227, %v273
        %v275 = vrot.slane %v274, 2
        %v276 = vadd.f32 %v274, %v275
        %v277 = vrot.slane %v276, 1
        %v278 = vadd.f32 %v276, %v277
        %v279 = vrot.slane %v228, 4
        %v280 = vadd.f32 %v228, %v279
        %v281 = vrot.slane %v280, 2
        %v282 = vadd.f32 %v280, %v281
        %v283 = vrot.slane %v282, 1
        %v284 = vadd.f32 %v282, %v283
        %v285 = vrot.slane %v229, 4
        %v286 = vadd.f32 %v229, %v285
        %v287 = vrot.slane %v286, 2
        %v288 = vadd.f32 %v286, %v287
        %v289 = vrot.slane %v288, 1
        %v290 = vadd.f32 %v288, %v289
        %v291 = vrot.slane %v230, 4
        %v292 = vadd.f32 %v230, %v291
        %v293 = vrot.slane %v292, 2
        %v294 = vadd.f32 %v292, %v293
        %v295 = vrot.slane %v294, 1
        %v296 = vadd.f32 %v294, %v295
        %v297 = vrot.slane %v231, 4
        %v298 = vadd.f32 %v231, %v297
        %v299 = vrot.slane %v298, 2
        %v300 = vadd.f32 %v298, %v299
        %v301 = vrot.slane %v300, 1
        %v302 = vadd.f32 %v300, %v301
        %v303 = vrot.slane %v232, 4
        %v304 = vadd.f32 %v232, %v303
        %v305 = vrot.slane %v304, 2
        %v306 = vadd.f32 %v304, %v305
        %v307 = vrot.slane %v306, 1
        %v308 = vadd.f32 %v306, %v307
        %v309 = vrot.slane %v233, 4
        %v310 = vadd.f32 %v233, %v309
        %v311 = vrot.slane %v310, 2
        %v312 = vadd.f32 %v310, %v311
        %v313 = vrot.slane %v312, 1
        %v314 = vadd.f32 %v312, %v313
        %v315 = vrot.slane %v234, 4
        %v316 = vadd.f32 %v234, %v315
        %v317 = vrot.slane %v316, 2
        %v318 = vadd.f32 %v316, %v317
        %v319 = vrot.slane %v318, 1
        %v320 = vadd.f32 %v318, %v319
        %v321 = vrot.slane %v235, 4
        %v322 = vadd.f32 %v235, %v321
        %v323 = vrot.slane %v322, 2
        %v324 = vadd.f32 %v322, %v323
        %v325 = vrot.slane %v324, 1
        %v326 = vadd.f32 %v324, %v325
        %v327 = vrot.slane %v236, 4
        %v328 = vadd.f32 %v236, %v327
        %v329 = vrot.slane %v328, 2
        %v330 = vadd.f32 %v328, %v329
        %v331 = vrot.slane %v330, 1
        %v332 = vadd.f32 %v330, %v331
        %v333 = vmul.f32 %v242, 0.125
        %v334 = vmul.f32 %v248, 0.125
        %v335 = vmul.f32 %v254, 0.125
        %v336 = vmul.f32 %v260, 0.125
        %v337 = vmul.f32 %v266, 0.125
        %v338 = vmul.f32 %v272, 0.125
        %v339 = vmul.f32 %v278, 0.125
        %v340 = vmul.f32 %v284, 0.125
        %v341 = vmul.f32 %v290, 0.125
        %v342 = vmul.f32 %v296, 0.125
        %v343 = vmul.f32 %v302, 0.125
        %v344 = vmul.f32 %v308, 0.125
        %v345 = vmul.f32 %v314, 0.125
        %v346 = vmul.f32 %v320, 0.125
        %v347 = vmul.f32 %v326, 0.125
        %v348 = vmul.f32 %v332, 0.125
        %349 = vst [vmem:[#allocation2] sm:$0xff] 0.0
        %350 = vst [vmem:[#allocation2 + $0x8] sm:$0xff] 0.0
        %351 = vst [vmem:[#allocation2 + $0x10] sm:$0x3f] 0.0
        %vm368 = vcmask 1041409
        %v369 = vsel %vm368, %v334, %v333
        %vm370 = vcmask 1042434
        %v371 = vsel %vm370, %v335, %v369
        %vm372 = vcmask 1043459
        %v373 = vsel %vm372, %v336, %v371
        %vm374 = vcmask 1044484
        %v375 = vsel %vm374, %v337, %v373
        %vm376 = vcmask 1045509
        %v377 = vsel %vm376, %v338, %v375
        %vm378 = vcmask 1046534
        %v379 = vsel %vm378, %v339, %v377
        %vm380 = vcmask 1047559
        %v381 = vsel %vm380, %v340, %v379
        %v382 = vsel %vm368, %v342, %v341
        %v383 = vsel %vm370, %v343, %v382
        %v384 = vsel %vm372, %v344, %v383
        %v385 = vsel %vm374, %v345, %v384
        %v386 = vsel %vm376, %v346, %v385
        %v387 = vsel %vm378, %v347, %v386
        %v388 = vsel %vm380, %v348, %v387
        %391 = vst [vmem:[#allocation2 + $0x3] sm:$0xff] %v381
        %392 = vst [vmem:[#allocation2 + $0xb] sm:$0xff] %v388
        %s393 = sld [smem:[#allocation4]]
        %v394 = vld [vmem:[#allocation2] sm:$0xff]
        %v395 = vld [vmem:[#allocation2 + $0x8] sm:$0xff]
        %v396 = vstv %s393
        %v397 = vmul.f32 %v396, %v394
        %v398 = vmul.f32 %v396, %v395
        %v399 = vadd.f32 %v397, 0.0
        %v400 = vadd.f32 %v398, 0.0
        %s401 = sld [smem:[#allocation4 + $0x1]]
        %v402 = vld [vmem:[#allocation2 + $0x1] sm:$0xff]
        %v403 = vld [vmem:[#allocation2 + $0x9] sm:$0xff]
        %v404 = vstv %s401
        %v405 = vmul.f32 %v404, %v402
        %v406 = vmul.f32 %v404, %v403
        %v407 = vadd.f32 %v399, %v405
        %v408 = vadd.f32 %v400, %v406
        %s409 = sld [smem:[#allocation4 + $0x2]]
        %v410 = vld [vmem:[#allocation2 + $0x2] sm:$0xff]
        %v411 = vld [vmem:[#allocation2 + $0xa] sm:$0xff]
        %v412 = vstv %s409
        %v413 = vmul.f32 %v412, %v410
        %v414 = vmul.f32 %v412, %v411
        %v415 = vadd.f32 %v407, %v413
        %v416 = vadd.f32 %v408, %v414
        %s417 = sld [smem:[#allocation4 + $0x3]]
        %v418 = vld [vmem:[#allocation2 + $0x3] sm:$0xff]
        %v419 = vld [vmem:[#allocation2 + $0xb] sm:$0xff]
        %v420 = vstv %s417
        %v421 = vmul.f32 %v420, %v418
        %v422 = vmul.f32 %v420, %v419
        %v423 = vadd.f32 %v415, %v421
        %v424 = vadd.f32 %v416, %v422
        %s425 = sld [smem:[#allocation4 + $0x4]]
        %v426 = vld [vmem:[#allocation2 + $0x4] sm:$0xff]
        %v427 = vld [vmem:[#allocation2 + $0xc] sm:$0xff]
        %v428 = vstv %s425
        %v429 = vmul.f32 %v428, %v426
        %v430 = vmul.f32 %v428, %v427
        %v431 = vadd.f32 %v423, %v429
        %v432 = vadd.f32 %v424, %v430
        %s433 = sld [smem:[#allocation4 + $0x5]]
        %v434 = vld [vmem:[#allocation2 + $0x5] sm:$0xff]
        %v435 = vld [vmem:[#allocation2 + $0xd] sm:$0xff]
        %v436 = vstv %s433
        %v437 = vmul.f32 %v436, %v434
        %v438 = vmul.f32 %v436, %v435
        %v439 = vadd.f32 %v431, %v437
        %v440 = vadd.f32 %v432, %v438
        %s441 = sld [smem:[#allocation4 + $0x6]]
        %v442 = vld [vmem:[#allocation2 + $0x6] sm:$0xff]
        %v443 = vld [vmem:[#allocation2 + $0xe] sm:$0xff]
        %v444 = vstv %s441
        %v445 = vmul.f32 %v444, %v442
        %v446 = vmul.f32 %v444, %v443
        %v447 = vadd.f32 %v439, %v445
        %v448 = vadd.f32 %v440, %v446
        %s449 = sld [smem:[#allocation3]]
        %v450 = vstv %s449
        %v451 = vadd.f32 %v447, %v450
        %v452 = vadd.f32 %v448, %v450
        %v453 = vmax.f32 %v451, %v452
        %v454 = vrot.slane %v453, 4
        %v455 = vmax.f32 %v453, %v454
        %v456 = vrot.slane %v455, 2
        %v457 = vmax.f32 %v455, %v456
        %v458 = vrot.slane %v457, 1
        %v459 = vmax.f32 %v457, %v458
        %v460 = vsub.f32 %v451, %v459
        %v461 = vsub.f32 %v452, %v459
        %v462 = vmul.f32 %v460, 1.442695
        %v463 = vpow.pop %v462
        %v464 = vmul.f32 %v461, 1.442695
        %v465 = vpow.pop %v464
        %v466 = vadd.f32 %v463, %v465
        %v467 = vrot.slane %v466, 4
        %v468 = vadd.f32 %v466, %v467
        %v469 = vrot.slane %v468, 2
        %v470 = vadd.f32 %v468, %v469
        %v471 = vrot.slane %v470, 1
        %v472 = vadd.f32 %v470, %v471
        %v473 = vrcp.pop %v472
        %v474 = vmul.f32 %v463, %v473
        %v475 = vmul.f32 %v465, %v473
        %v476 = vmul.f32 %v474, 16.0
        %v477 = vmul.f32 %v475, 16.0
        %v480 = vcombine.high %v476, %v476
        %v482 = vunpack.c.l.s4 1966171168
        %v483 = vunpack.c.0.s8 %v482
        %v484 = vlaneseq
        %v485 = vshrl.u32 %v484, 7
        %v486 = vsub.s32 %v483, %v485
        %v487 = vrot.slane %v476, %v486
        %v489 = vunpack.c.l.s4 1966171168
        %v490 = vunpack.c.0.s8 %v489
        %v491 = vlaneseq
        %v492 = vshrl.u32 %v491, 7
        %v493 = vsub.s32 %v490, %v492
        %v494 = vrot.slane %v480, %v493
        %v495 = vcombine.high %v487, %v487
        %v496 = vcombine.high %v494, %v494
        %v498 = vunpack.c.l.s4 1966171168
        %v499 = vunpack.c.0.s8 %v498
        %v500 = vlaneseq
        %v501 = vshrl.u32 %v500, 7
        %v502 = vsub.s32 %v499, %v501
        %v503 = vrot.slane %v487, %v502
        %v505 = vunpack.c.l.s4 1966171168
        %v506 = vunpack.c.0.s8 %v505
        %v507 = vlaneseq
        %v508 = vshrl.u32 %v507, 7
        %v509 = vsub.s32 %v506, %v508
        %v510 = vrot.slane %v494, %v509
        %v512 = vunpack.c.l.s4 1966171168
        %v513 = vunpack.c.0.s8 %v512
        %v514 = vlaneseq
        %v515 = vshrl.u32 %v514, 7
        %v516 = vsub.s32 %v513, %v515
        %v517 = vrot.slane %v495, %v516
        %v519 = vunpack.c.l.s4 1966171168
        %v520 = vunpack.c.0.s8 %v519
        %v521 = vlaneseq
        %v522 = vshrl.u32 %v521, 7
        %v523 = vsub.s32 %v520, %v522
        %v524 = vrot.slane %v496, %v523
        %v525 = vcombine.high %v503, %v503
        %v526 = vcombine.high %v510, %v510
        %v527 = vcombine.high %v517, %v517
        %v528 = vcombine.high %v524, %v524
        %v529 = vcombine.high %v477, %v477
        %v531 = vunpack.c.l.s4 1966171168
        %v532 = vunpack.c.0.s8 %v531
        %v533 = vlaneseq
        %v534 = vshrl.u32 %v533, 7
        %v535 = vsub.s32 %v532, %v534
        %v536 = vrot.slane %v477, %v535
        %v538 = vunpack.c.l.s4 1966171168
        %v539 = vunpack.c.0.s8 %v538
        %v540 = vlaneseq
        %v541 = vshrl.u32 %v540, 7
        %v542 = vsub.s32 %v539, %v541
        %v543 = vrot.slane %v529, %v542
        %v544 = vcombine.high %v536, %v536
        %v545 = vcombine.high %v543, %v543
        %v547 = vunpack.c.l.s4 1966171168
        %v548 = vunpack.c.0.s8 %v547
        %v549 = vlaneseq
        %v550 = vshrl.u32 %v549, 7
        %v551 = vsub.s32 %v548, %v550
        %v552 = vrot.slane %v536, %v551
        %v554 = vunpack.c.l.s4 1966171168
        %v555 = vunpack.c.0.s8 %v554
        %v556 = vlaneseq
        %v557 = vshrl.u32 %v556, 7
        %v558 = vsub.s32 %v555, %v557
        %v559 = vrot.slane %v543, %v558
        %v561 = vunpack.c.l.s4 1966171168
        %v562 = vunpack.c.0.s8 %v561
        %v563 = vlaneseq
        %v564 = vshrl.u32 %v563, 7
        %v565 = vsub.s32 %v562, %v564
        %v566 = vrot.slane %v544, %v565
        %v568 = vunpack.c.l.s4 1966171168
        %v569 = vunpack.c.0.s8 %v568
        %v570 = vlaneseq
        %v571 = vshrl.u32 %v570, 7
        %v572 = vsub.s32 %v569, %v571
        %v573 = vrot.slane %v545, %v572
        %v574 = vcombine.high %v552, %v552
        %v575 = vcombine.high %v559, %v559
        %v576 = vcombine.high %v566, %v566
        %v577 = vcombine.high %v573, %v573
        %v578 = vlaneseq
        %v579 = vshrl.u32 %v578, 7
        %v580 = vsub.s32 0, %v579
        %v581 = vrot.slane %v503, %v580
        %v582 = vlaneseq
        %v583 = vshrl.u32 %v582, 7
        %v584 = vsub.s32 0, %v583
        %v585 = vrot.slane %v517, %v584
        %v586 = vlaneseq
        %v587 = vshrl.u32 %v586, 7
        %v588 = vsub.s32 0, %v587
        %v589 = vrot.slane %v525, %v588
        %v590 = vlaneseq
        %v591 = vshrl.u32 %v590, 7
        %v592 = vsub.s32 0, %v591
        %v593 = vrot.slane %v527, %v592
        %v594 = vlaneseq
        %v595 = vshrl.u32 %v594, 7
        %v596 = vsub.s32 0, %v595
        %v597 = vrot.slane %v510, %v596
        %v598 = vlaneseq
        %v599 = vshrl.u32 %v598, 7
        %v600 = vsub.s32 0, %v599
        %v601 = vrot.slane %v524, %v600
        %v602 = vlaneseq
        %v603 = vshrl.u32 %v602, 7
        %v604 = vsub.s32 0, %v603
        %v605 = vrot.slane %v526, %v604
        %v606 = vlaneseq
        %v607 = vshrl.u32 %v606, 7
        %v608 = vsub.s32 0, %v607
        %v609 = vrot.slane %v528, %v608
        %v610 = vlaneseq
        %v611 = vshrl.u32 %v610, 7
        %v612 = vsub.s32 0, %v611
        %v613 = vrot.slane %v552, %v612
        %v614 = vlaneseq
        %v615 = vshrl.u32 %v614, 7
        %v616 = vsub.s32 0, %v615
        %v617 = vrot.slane %v566, %v616
        %v618 = vlaneseq
        %v619 = vshrl.u32 %v618, 7
        %v620 = vsub.s32 0, %v619
        %v621 = vrot.slane %v574, %v620
        %v622 = vlaneseq
        %v623 = vshrl.u32 %v622, 7
        %v624 = vsub.s32 0, %v623
        %v625 = vrot.slane %v576, %v624
        %v626 = vlaneseq
        %v627 = vshrl.u32 %v626, 7
        %v628 = vsub.s32 0, %v627
        %v629 = vrot.slane %v559, %v628
        %v630 = vlaneseq
        %v631 = vshrl.u32 %v630, 7
        %v632 = vsub.s32 0, %v631
        %v633 = vrot.slane %v573, %v632
        %v634 = vlaneseq
        %v635 = vshrl.u32 %v634, 7
        %v636 = vsub.s32 0, %v635
        %v637 = vrot.slane %v575, %v636
        %v638 = vlaneseq
        %v639 = vshrl.u32 %v638, 7
        %v640 = vsub.s32 0, %v639
        %v641 = vrot.slane %v577, %v640
        %v658 = vmul.f32 %v581, %v221
        %v659 = vmul.f32 %v585, %v222
        %v660 = vmul.f32 %v589, %v223
        %v661 = vmul.f32 %v593, %v224
        %v662 = vmul.f32 %v597, %v225
        %v663 = vmul.f32 %v601, %v226
        %v664 = vmul.f32 %v605, %v227
        %v665 = vmul.f32 %v609, %v228
        %v666 = vmul.f32 %v613, %v229
        %v667 = vmul.f32 %v617, %v230
        %v668 = vmul.f32 %v621, %v231
        %v669 = vmul.f32 %v625, %v232
        %v670 = vmul.f32 %v629, %v233
        %v671 = vmul.f32 %v633, %v234
        %v672 = vmul.f32 %v637, %v235
        %v673 = vmul.f32 %v641, %v236
        %674 = vst [vmem:[%s220] sm:$0xff] %v658
        %675 = vst [vmem:[%s220 + $0x8] sm:$0xff] %v659
        %676 = vst [vmem:[%s220 + $0x10] sm:$0xff] %v660
        %677 = vst [vmem:[%s220 + $0x18] sm:$0xff] %v661
        %678 = vst [vmem:[%s220 + $0x20] sm:$0xff] %v662
        %679 = vst [vmem:[%s220 + $0x28] sm:$0xff] %v663
        %680 = vst [vmem:[%s220 + $0x30] sm:$0xff] %v664
        %681 = vst [vmem:[%s220 + $0x38] sm:$0xff] %v665
        %682 = vst [vmem:[%s220 + $0x40] sm:$0xff] %v666
        %683 = vst [vmem:[%s220 + $0x48] sm:$0xff] %v667
        %684 = vst [vmem:[%s220 + $0x50] sm:$0xff] %v668
        %685 = vst [vmem:[%s220 + $0x58] sm:$0xff] %v669
        %686 = vst [vmem:[%s220 + $0x60] sm:$0xff] %v670
        %687 = vst [vmem:[%s220 + $0x68] sm:$0xff] %v671
        %688 = vst [vmem:[%s220 + $0x70] sm:$0xff] %v672
        %689 = vst [vmem:[%s220 + $0x78] sm:$0xff] %v673
        %s690 = sand.u32 %s114, 1
        %s691 = scalar_lea.sflag [#allocation6], %s690
        %s692 = sand.u32 %s114, 1
        %s693 = smul.addr %s692, 128
        %s694 = scalar_lea.vmem [#allocation9], %s693
        // Predicated region
        $region41: #{tpu_custom_call.1} parent=31 // pred_check
          %p695 = pneg %p124
        $region42: #{tpu_custom_call.1} parent=31 // pred_check_branch
          %697 = sbr.rel (%p695) target = $region44
        $region43: #{tpu_custom_call.1} parent=31 // pred_region
          %s699 = ssub.s32 2048, 2048
          %700 = vsyncadd %s691, %s699
          %s701 = smul.addr %s26, 16
          %s702 = sadd.s32 %s27, %s701
          %s703 = smul.addr %s702, 128
          %s704 = scalar_lea.hbm %s3, %s703
          %s705 = sshll.u32 %s694, 4
          %s706 = int_to_ptr.vmem [resolvable:$true] %s705
          %711 = dma.vmem_to_hbm [thread:$0]  %s706, 2048, %s704, %s691, 128, 128, 8
        $region44: #{tpu_custom_call.1} parent=31 // pred_fallthru
          _
      $region32: #{tpu_custom_call.1} parent=5 // pred_fallthru
        _
      %p712 = scmp.le.s32.totalorder 2, %s17
      // Predicated region
      $region45: #{tpu_custom_call.1} parent=5 // pred_check
        %p713 = pneg %p712
      $region46: #{tpu_custom_call.1} parent=5 // pred_check_branch
        %715 = sbr.rel (%p713) target = $region48
      $region47: #{tpu_custom_call.1} parent=5 // pred_region
        %s716 = ssub.s32 %s17, 2
        // Predicated region
        $region49: #{tpu_custom_call.1} parent=47 // pred_check
          %p717 = pneg %p130
        $region50: #{tpu_custom_call.1} parent=47 // pred_check_branch
          %719 = sbr.rel (%p717) target = $region52
        $region51: #{tpu_custom_call.1} parent=47 // pred_region
          %s720 = sand.u32 %s115, 1
          %s721 = scalar_lea.sflag [#allocation6], %s720
          %s722 = sand.u32 %s115, 1
          %s723 = smul.addr %s722, 128
          %s724 = scalar_lea.vmem [#allocation9], %s723
          %725 = dma.done %s721, 2048
        $region52: #{tpu_custom_call.1} parent=47 // pred_fallthru
          _
      $region48: #{tpu_custom_call.1} parent=5 // pred_fallthru
        _
    $region6: #{tpu_custom_call.1} parent=1 // loop_footer
      %s21 = sadd.s32 1, %s17
    $region7: #{tpu_custom_call.1} parent=1 // loop_footer_branch
      %16 = sbr.rel target = $region3
    $region8: #{tpu_custom_call.1} parent=1 // loop_exit
      _
    %726 = vsyncpa [#allocation5], 1
    %s727 = scalar_lea.sflag [#allocation5], 1
    %728 = vsyncpa %s727, 1
    %729 = vsyncpa [#allocation6], 1
    %s730 = scalar_lea.sflag [#allocation6], 1
    %731 = vsyncpa %s730, 1
    %732 = vsyncpa [#allocation7], 1
    %s733 = scalar_lea.sflag [#allocation7], 1
    %734 = vsyncpa %s733, 1

</llo_original>
